<compile_context>
chip_gen: v5e
topology: v5e:2x2
jax: 0.10.0
libtpu: 0.0.40
codegen_flags: <defaults>
</compile_context>

<pallas_src>
import jax
import jax.numpy as jnp
from jax import lax
from jax.experimental import pallas as pl
from jax.experimental.pallas import tpu as pltpu

LANES = 128
SUBLANES = 8
MAX_SINGLE_ROWS = 512     # <= 256 KiB (f32) per input -> single-block path
CHUNK_ROWS = 512          # inner compute chunk (256 KiB f32 per input)
N_CORES = 2               # leading "parallel" axis (both TCs on v7x)


def _pick_tile_rows():
    """DMA block rows per grid step, sized to the default scoped VMEM."""
    try:
        kind = jax.devices()[0].device_kind.lower()
    except Exception:
        return 4096
    if ("v6" in kind) or ("v7" in kind) or ("7x" in kind):
        # 32 MiB default scoped VMEM: 8192 rows -> 3 inputs x 2 bufs x 4 MiB.
        return 8192
    # v5e (16 MiB default) and anything unknown: 4096 rows -> 12 MiB windows.
    return 4096


# ---------------------------------------------------------------------------
# Single-block path (tiny inputs): whole problem in one VMEM block.
# ---------------------------------------------------------------------------
def _masked_l1_single_kernel(p_ref, t_ref, m_ref, out_ref):
    p = p_ref[...].astype(jnp.float32)
    t = t_ref[...].astype(jnp.float32)
    m = m_ref[...].astype(jnp.float32)
    num = jnp.sum(jnp.abs(p - t) * m)
    den = jnp.sum(m)
    out_ref[0, 0] = num / den


# ---------------------------------------------------------------------------
# Streaming path: (core, block) grid, chunked compute, per-core partial slabs.
# ---------------------------------------------------------------------------
def _masked_l1_tiled_kernel(nrows_ref, p_ref, t_ref, m_ref, num_out, den_out):
    c = pl.program_id(0)              # core-split axis ("parallel")
    i = pl.program_id(1)              # streaming/reduction axis ("arbitrary")
    blocks_per_core = pl.num_programs(1)

    @pl.when(i == 0)
    def _():
        num_out[...] = jnp.zeros_like(num_out)
        den_out[...] = jnp.zeros_like(den_out)

    nrows = nrows_ref[0]
    row_block = p_ref.shape[0]
    n_chunks = row_block // CHUNK_ROWS            # static
    # Global row offset of this (unclamped) block; used for tail masking, so
    # fully-out-of-range (clamped) blocks contribute exactly zero.
    block_row0 = (c * blocks_per_core + i) * row_block

    def chunk(j, carry):
        num_part, den_part = carry
        r0 = pl.multiple_of(j * CHUNK_ROWS, CHUNK_ROWS)
        p = p_ref[pl.ds(r0, CHUNK_ROWS), :].astype(jnp.float32)
        t = t_ref[pl.ds(r0, CHUNK_ROWS), :].astype(jnp.float32)
        m = m_ref[pl.ds(r0, CHUNK_ROWS), :].astype(jnp.float32)
        rows = lax.broadcasted_iota(jnp.int32, (CHUNK_ROWS, LANES), 0)
        valid = (block_row0 + r0 + rows) < nrows
        v = jnp.where(valid, jnp.abs(p - t) * m, 0.0)
        m = jnp.where(valid, m, 0.0)
        # Fold the (CHUNK_ROWS,128) chunk into (8,128) vreg-shaped partials
        # with pure VPU adds across vregs (no per-chunk cross-lane reduce).
        num_part = num_part + v.reshape(
            CHUNK_ROWS // SUBLANES, SUBLANES, LANES).sum(axis=0)
        den_part = den_part + m.reshape(
            CHUNK_ROWS // SUBLANES, SUBLANES, LANES).sum(axis=0)
        return num_part, den_part

    zeros = jnp.zeros((SUBLANES, LANES), jnp.float32)
    num_part, den_part = lax.fori_loop(0, n_chunks, chunk, (zeros, zeros),
                                       unroll=True)
    num_out[...] += num_part[None]
    den_out[...] += den_part[None]


# ---------------------------------------------------------------------------
# Wrapper
# ---------------------------------------------------------------------------
def masked_l1_loss(preds, targets, mask):
    assert preds.shape == targets.shape == mask.shape
    if mask.dtype == jnp.bool_:
        mask = mask.astype(jnp.int8)   # 1 byte/elem, robust in-kernel upcast

    total = preds.size
    # Pad only to a SUBLANES*LANES (1024-element) boundary; in-kernel masking
    # handles the rest, so no padding to a block multiple is ever done.
    n_rows = pl.cdiv(total, SUBLANES * LANES) * SUBLANES
    pad = n_rows * LANES - total

    def prep(x):
        x = x.reshape(-1)
        if pad:
            # TODO(synk): unaligned shapes still pay one HBM copy here; fully
            # copy-free handling of a non-1024-multiple tail is not expressible
            # with a rectangular BlockSpec slab.
            x = jnp.pad(x, (0, pad))
        return x.reshape(n_rows, LANES)

    p2, t2, m2 = prep(preds), prep(targets), prep(mask)

    if n_rows <= MAX_SINGLE_ROWS:
        # ---- single-step path (the actual test-case size) ----
        blk = pl.BlockSpec((n_rows, LANES), lambda i: (0, 0))
        out = pl.pallas_call(
            _masked_l1_single_kernel,
            out_shape=jax.ShapeDtypeStruct((1, 1), jnp.float32),
            grid_spec=pltpu.PrefetchScalarGridSpec(
                num_scalar_prefetch=0,
                grid=(1,),
                in_specs=[blk, blk, blk],
                out_specs=pl.BlockSpec((1, 1), lambda i: (0, 0),
                                       memory_space=pltpu.SMEM),
            ),
            compiler_params=pltpu.CompilerParams(
                dimension_semantics=("arbitrary",)),
        )(p2, t2, m2)
        return out[0, 0]

    # ---- streaming path ----
    tile_rows = _pick_tile_rows()
    row_block = min(tile_rows, pl.cdiv(n_rows, CHUNK_ROWS) * CHUNK_ROWS)
    n_blocks = pl.cdiv(n_rows, row_block)
    blocks_per_core = pl.cdiv(n_blocks, N_CORES)

    def in_map(c, i, nrows):
        blk_idx = c * blocks_per_core + i
        # Clamp so fully-out-of-range grid points DMA a valid (the last) block;
        # the kernel's row mask zeroes their contribution.
        return (jnp.minimum(blk_idx, n_blocks - 1), 0)

    in_blk = pl.BlockSpec((row_block, LANES), in_map)
    out_blk = pl.BlockSpec((1, SUBLANES, LANES), lambda c, i, nrows: (c, 0, 0))
    part_shape = jax.ShapeDtypeStruct((N_CORES, SUBLANES, LANES), jnp.float32)

    nrows_arr = jnp.array([n_rows], dtype=jnp.int32)

    num_p, den_p = pl.pallas_call(
        _masked_l1_tiled_kernel,
        out_shape=(part_shape, part_shape),
        grid_spec=pltpu.PrefetchScalarGridSpec(
            num_scalar_prefetch=1,
            grid=(N_CORES, blocks_per_core),
            in_specs=[in_blk, in_blk, in_blk],
            out_specs=[out_blk, out_blk],
        ),
        compiler_params=pltpu.CompilerParams(
            # Core-split axis parallel (megacore), reduction axis arbitrary.
            dimension_semantics=("parallel", "arbitrary")),
    )(nrows_arr, p2, t2, m2)

    # Tiny wrapper-side combine of the per-core (8,128) partial slabs.
    return jnp.sum(num_p) / jnp.sum(den_p)


if __name__ == "__main__":
    key = jax.random.PRNGKey(0)
    k1, k2, k3 = jax.random.split(key, 3)

    # NCHW inputs consistent with a small dense-prediction setup.
    shape = (2, 4, 16, 16)
    preds = jax.random.normal(k1, shape, dtype=jnp.float32)
    targets = jax.random.normal(k2, shape, dtype=jnp.float32)
    mask = (jax.random.uniform(k3, shape) > 0.5).astype(jnp.float32)

    loss = jax.block_until_ready(masked_l1_loss(preds, targets, mask))
    ref = jnp.sum(jnp.abs(preds - targets) * mask) / jnp.sum(mask)
    assert jnp.allclose(loss, ref, rtol=1e-5, atol=1e-5), (loss, ref)

    # Streaming path: large input, bool mask (narrow-dtype bandwidth path).
    big_shape = (4, 8, 256, 256)          # 2M elems -> 16384 rows
    bp = jax.random.normal(k1, big_shape, dtype=jnp.float32)
    bt = jax.random.normal(k2, big_shape, dtype=jnp.float32)
    bm = jax.random.uniform(k3, big_shape) > 0.5
    big_loss = jax.block_until_ready(masked_l1_loss(bp, bt, bm))
    bmf = bm.astype(jnp.float32)
    big_ref = jnp.sum(jnp.abs(bp - bt) * bmf) / jnp.sum(bmf)
    assert jnp.allclose(big_loss, big_ref, rtol=1e-4, atol=1e-4), (big_loss, big_ref)

    # Streaming path with an unaligned shape: exercises 1024-elem padding,
    # the partial last block, and the clamped/masked out-of-range grid points.
    odd_shape = (1, 3, 257, 129)          # 99,459 elems -> 784 padded rows
    op = jax.random.normal(k1, odd_shape, dtype=jnp.float32)
    ot = jax.random.normal(k2, odd_shape, dtype=jnp.float32)
    om = (jax.random.uniform(k3, odd_shape) > 0.5).astype(jnp.float32)
    odd_loss = jax.block_until_ready(masked_l1_loss(op, ot, om))
    odd_ref = jnp.sum(jnp.abs(op - ot) * om) / jnp.sum(om)
    assert jnp.allclose(odd_loss, odd_ref, rtol=1e-4, atol=1e-4), (odd_loss, odd_ref)

    print("KERNEL_OK")
</pallas_src>

<mosaic_0001>
module attributes {stable_mosaic.version = 11 : i64} {
  func.func @_masked_l1_single_kernel(%arg0: i32, %arg1: memref<16x128xf32, #tpu.memory_space<vmem>>, %arg2: memref<16x128xf32, #tpu.memory_space<vmem>>, %arg3: memref<16x128xf32, #tpu.memory_space<vmem>>, %arg4: memref<1x1xf32, #tpu.memory_space<smem>>) attributes {dimension_semantics = [#tpu.dimension_semantics<arbitrary>], iteration_bounds = array<i64: 1>, scalar_prefetch = 0 : i64, scratch_operands = 0 : i64, tpu.core_type = #tpu.core_type<tc>, window_params = [{pipeline_mode = #tpu.pipeline_mode<synchronous>, transform_indices = @transform_0, window_bounds = array<i64: 16, 128>}, {pipeline_mode = #tpu.pipeline_mode<synchronous>, transform_indices = @transform_1, window_bounds = array<i64: 16, 128>}, {pipeline_mode = #tpu.pipeline_mode<synchronous>, transform_indices = @transform_2, window_bounds = array<i64: 16, 128>}, {transform_indices = @transform_3, window_bounds = array<i64: 1, 1>}]} {
    %c0 = arith.constant 0 : index
    %c0_0 = arith.constant 0 : index
    %0 = vector.load %arg1[%c0, %c0_0] : memref<16x128xf32, #tpu.memory_space<vmem>>, vector<16x128xf32>
    %c0_1 = arith.constant 0 : index
    %c0_2 = arith.constant 0 : index
    %1 = vector.load %arg2[%c0_1, %c0_2] : memref<16x128xf32, #tpu.memory_space<vmem>>, vector<16x128xf32>
    %c0_3 = arith.constant 0 : index
    %c0_4 = arith.constant 0 : index
    %2 = vector.load %arg3[%c0_3, %c0_4] : memref<16x128xf32, #tpu.memory_space<vmem>>, vector<16x128xf32>
    %3 = arith.subf %0, %1 : vector<16x128xf32>
    %4 = math.absf %3 : vector<16x128xf32>
    %5 = arith.mulf %4, %2 : vector<16x128xf32>
    %6 = vector.shape_cast %5 : vector<16x128xf32> to vector<1x16x128xf32>
    %cst = arith.constant dense<0.000000e+00> : vector<1xf32>
    %7 = vector.multi_reduction <add>, %6, %cst [1, 2] : vector<1x16x128xf32> to vector<1xf32>
    %8 = vector.shape_cast %7 : vector<1xf32> to vector<1x1x1xf32>
    %9 = vector.extract %8[0, 0, 0] : f32 from vector<1x1x1xf32>
    %10 = vector.shape_cast %2 : vector<16x128xf32> to vector<1x16x128xf32>
    %cst_5 = arith.constant dense<0.000000e+00> : vector<1xf32>
    %11 = vector.multi_reduction <add>, %10, %cst_5 [1, 2] : vector<1x16x128xf32> to vector<1xf32>
    %12 = vector.shape_cast %11 : vector<1xf32> to vector<1x1x1xf32>
    %13 = vector.extract %12[0, 0, 0] : f32 from vector<1x1x1xf32>
    %14 = arith.divf %9, %13 : f32
    %c0_6 = arith.constant 0 : index
    %c0_7 = arith.constant 0 : index
    %15 = memref.load %arg4[%c0_6, %c0_7] : memref<1x1xf32, #tpu.memory_space<smem>>
    memref.store %14, %arg4[%c0_6, %c0_7] : memref<1x1xf32, #tpu.memory_space<smem>>
    return
  }
  func.func @transform_0(%arg0: i32) -> (i32, i32) {
    %c0_i32 = arith.constant 0 : i32
    %c0_i32_0 = arith.constant 0 : i32
    %c0_i32_1 = arith.constant 0 : i32
    return %c0_i32, %c0_i32_0 : i32, i32
  }
  func.func @transform_1(%arg0: i32) -> (i32, i32) {
    %c0_i32 = arith.constant 0 : i32
    %c0_i32_0 = arith.constant 0 : i32
    %c0_i32_1 = arith.constant 0 : i32
    return %c0_i32, %c0_i32_0 : i32, i32
  }
  func.func @transform_2(%arg0: i32) -> (i32, i32) {
    %c0_i32 = arith.constant 0 : i32
    %c0_i32_0 = arith.constant 0 : i32
    %c0_i32_1 = arith.constant 0 : i32
    return %c0_i32, %c0_i32_0 : i32, i32
  }
  func.func @transform_3(%arg0: i32) -> (i32, i32) {
    %c0_i32 = arith.constant 0 : i32
    %c0_i32_0 = arith.constant 0 : i32
    %c0_i32_1 = arith.constant 0 : i32
    return %c0_i32, %c0_i32_0 : i32, i32
  }
}

</mosaic_0001>

<llo_original>
// kernel: tpu_custom_call.1
$region0: #{tpu_custom_call.1}
  #allocation0 [shape = 'u32[]', space=smem, size = 0x4, offset = 0x4, fixed_abs, tag = 'smem constant byte address 0x4 - core index']
  #allocation1 [shape = 'u32[72,128]{1,0:T(1,128)}', space=vmem, size = 0x9000, scoped, tag = 'internal scratch']
  %s0 = inlined_call_operand.hbm [shape: f32[16,128], index: 0, kind: input, shape index: {}]
  %s1 = inlined_call_operand.hbm [shape: f32[16,128], index: 1, kind: input, shape index: {}]
  %s2 = inlined_call_operand.hbm [shape: f32[16,128], index: 2, kind: input, shape index: {}]
  %s3 = inlined_call_operand.hbm [shape: f32[1,1], index: 3, kind: output, shape index: {}]
  %s4 = sld [smem:[#allocation0]]
  $region34: #{tpu_custom_call.1} parent=0
    _
  %s6 = ssub.s32 1, %s4
  %s7 = scalar_select 0, %s6, %s4
  $region1: #{tpu_custom_call.1} parent=0
    #allocation2 [shape = 'u8[8192]{0}', space=vmem, size = 0x2000, scoped, tag = 'input window, operand 0, single buffered']
    #allocation3 [shape = 's32[1]{0}', space=sflag, size = 0x4, scoped, tag = 'scoped memory for tpu_custom_call.1']
    #allocation4 [shape = 's32[1]{0}', space=sflag, size = 0x4, scoped, tag = 'scoped memory for tpu_custom_call.1']
    #allocation5 [shape = 'u8[8192]{0}', space=vmem, size = 0x2000, scoped, tag = 'input window, operand 1, single buffered']
    #allocation6 [shape = 's32[1]{0}', space=sflag, size = 0x4, scoped, tag = 'scoped memory for tpu_custom_call.1']
    #allocation7 [shape = 'u8[8192]{0}', space=vmem, size = 0x2000, scoped, tag = 'input window, operand 2, single buffered']
    #allocation8 [shape = 'u8[512]{0}', space=smem, size = 0x200, scoped, tag = 'output window, operand 0, single buffered']
    %8 = vsyncpa [#allocation3], 0
    %9 = vsyncpa [#allocation6], 0
    %10 = vsyncpa [#allocation4], 0
    // Predicated region
    $region2: #{tpu_custom_call.1} parent=1 // pred_check
      _
    $region3: #{tpu_custom_call.1} parent=1 // pred_check_branch
      %12 = sbr.rel (0) target = $region5
    $region4: #{tpu_custom_call.1} parent=1 // pred_region
      %14 = vsyncadd [#allocation3], 0
      %s15 = sshll.u32 %s0, 4
      %s16 = int_to_ptr.hbm [resolvable:$true] %s15
      %s17 = sshll.u32 [#allocation2], 4
      %s18 = int_to_ptr.vmem [resolvable:$true] %s17
      %23 = dma.hbm_to_vmem [thread:$0]  %s16, 256, %s18, [#allocation3], 128, 128, 8
    $region5: #{tpu_custom_call.1} parent=1 // pred_fallthru
      _
    // Predicated region
    $region6: #{tpu_custom_call.1} parent=1 // pred_check
      _
    $region7: #{tpu_custom_call.1} parent=1 // pred_check_branch
      %25 = sbr.rel (0) target = $region9
    $region8: #{tpu_custom_call.1} parent=1 // pred_region
      %27 = vsyncadd [#allocation6], 0
      %s28 = sshll.u32 %s1, 4
      %s29 = int_to_ptr.hbm [resolvable:$true] %s28
      %s30 = sshll.u32 [#allocation5], 4
      %s31 = int_to_ptr.vmem [resolvable:$true] %s30
      %36 = dma.hbm_to_vmem [thread:$0]  %s29, 256, %s31, [#allocation6], 128, 128, 8
    $region9: #{tpu_custom_call.1} parent=1 // pred_fallthru
      _
    // Predicated region
    $region10: #{tpu_custom_call.1} parent=1 // pred_check
      _
    $region11: #{tpu_custom_call.1} parent=1 // pred_check_branch
      %38 = sbr.rel (0) target = $region13
    $region12: #{tpu_custom_call.1} parent=1 // pred_region
      %40 = vsyncadd [#allocation6], 0
      %s41 = sshll.u32 %s2, 4
      %s42 = int_to_ptr.hbm [resolvable:$true] %s41
      %s43 = sshll.u32 [#allocation7], 4
      %s44 = int_to_ptr.vmem [resolvable:$true] %s43
      %49 = dma.hbm_to_vmem [thread:$0]  %s42, 256, %s44, [#allocation6], 128, 128, 8
    $region13: #{tpu_custom_call.1} parent=1 // pred_fallthru
      _
    // Predicated region
    $region14: #{tpu_custom_call.1} parent=1 // pred_check
      _
    $region15: #{tpu_custom_call.1} parent=1 // pred_check_branch
      %51 = sbr.rel (0) target = $region17
    $region16: #{tpu_custom_call.1} parent=1 // pred_region
      %53 = dma.done [#allocation3], 256
    $region17: #{tpu_custom_call.1} parent=1 // pred_fallthru
      _
    // Predicated region
    $region18: #{tpu_custom_call.1} parent=1 // pred_check
      _
    $region19: #{tpu_custom_call.1} parent=1 // pred_check_branch
      %55 = sbr.rel (0) target = $region21
    $region20: #{tpu_custom_call.1} parent=1 // pred_region
      %57 = dma.done [#allocation6], 256
    $region21: #{tpu_custom_call.1} parent=1 // pred_fallthru
      _
    // Predicated region
    $region22: #{tpu_custom_call.1} parent=1 // pred_check
      _
    $region23: #{tpu_custom_call.1} parent=1 // pred_check_branch
      %59 = sbr.rel (0) target = $region25
    $region24: #{tpu_custom_call.1} parent=1 // pred_region
      %61 = dma.done [#allocation6], 256
    $region25: #{tpu_custom_call.1} parent=1 // pred_fallthru
      _
    %v62 = vld [vmem:[#allocation2] sm:$0xff]
    %v63 = vld [vmem:[#allocation2 + $0x8] sm:$0xff]
    %v64 = vld [vmem:[#allocation5] sm:$0xff]
    %v65 = vld [vmem:[#allocation5 + $0x8] sm:$0xff]
    %v66 = vld [vmem:[#allocation7] sm:$0xff]
    %v67 = vld [vmem:[#allocation7 + $0x8] sm:$0xff]
    %v68 = vsub.f32 %v62, %v64
    %v69 = vsub.f32 %v63, %v65
    %v70 = vand.u32 2147483647, %v68
    %v71 = vand.u32 2147483647, %v69
    %v72 = vmul.f32 %v70, %v66
    %v73 = vmul.f32 %v71, %v67
    %v74 = vadd.f32 %v72, %v73
    %75 = vadd.xlane.f32.xlu0 %v74
    %v76 = vpop.xlane.xlu0 %75
    %v77 = vrot.slane %v76, 4
    %v78 = vadd.f32 %v76, %v77
    %v79 = vrot.slane %v78, 2
    %v80 = vadd.f32 %v78, %v79
    %v81 = vrot.slane %v80, 1
    %v82 = vadd.f32 %v80, %v81
    %s83 = vtos %v82
    %v84 = vadd.f32 %v66, %v67
    %85 = vadd.xlane.f32.xlu0 %v84
    %v86 = vpop.xlane.xlu0 %85
    %v87 = vrot.slane %v86, 4
    %v88 = vadd.f32 %v86, %v87
    %v89 = vrot.slane %v88, 2
    %v90 = vadd.f32 %v88, %v89
    %v91 = vrot.slane %v90, 1
    %v92 = vadd.f32 %v90, %v91
    %s93 = vtos %v92
    %v94 = vstv %s93
    %v95 = vrcp.pop %v94
    %v96 = vmul.f32 %v94, %v95
    %v97 = vsub.f32 1.0, %v96
    %v98 = vmul.f32 %v95, %v97
    %v99 = vadd.f32 %v95, %v98
    %vm100 = vweird.f32 %v94
    %vm101 = vweird.f32 %v95
    %vm102 = vmor %vm100, %vm101
    %v103 = vsel %vm102, %v95, %v99
    %v104 = vand.u32 2147483647, %v94
    %vm105 = vcmp.eq.f32.partialorder %v104, 8.507059e+37
    %v106 = vand.u32 %v94, 2147483648
    %v107 = vor.u32 1.1754944e-38, %v106
    %v108 = vsel %vm105, %v107, %v103
    %s109 = vtos %v108
    %s110 = smul.f32 %s83, %s109
    %s111 = scalar_lea.smem [#allocation8], 0
    %112 = sst [smem:[%s111]] %s110
    // Predicated region
    $region26: #{tpu_custom_call.1} parent=1 // pred_check
      _
    $region27: #{tpu_custom_call.1} parent=1 // pred_check_branch
      %114 = sbr.rel (0) target = $region29
    $region28: #{tpu_custom_call.1} parent=1 // pred_region
      %116 = vsyncadd [#allocation4], 0
      %s118 = sshll.u32 %s3, 4
      %s119 = int_to_ptr.hbm [resolvable:$true] %s118
      %121 = dma.smem_to_hbm [#allocation8], 16, %s119, [#allocation4]
    $region29: #{tpu_custom_call.1} parent=1 // pred_fallthru
      _
    // Predicated region
    $region30: #{tpu_custom_call.1} parent=1 // pred_check
      _
    $region31: #{tpu_custom_call.1} parent=1 // pred_check_branch
      %123 = sbr.rel (0) target = $region33
    $region32: #{tpu_custom_call.1} parent=1 // pred_region
      %125 = dma.done [#allocation4], 16
    $region33: #{tpu_custom_call.1} parent=1 // pred_fallthru
      _
    %126 = sfence
    %127 = vsyncpa [#allocation3], 1
    %128 = vsyncpa [#allocation6], 1
    %129 = vsyncpa [#allocation4], 1

</llo_original>
